<compile_context>
chip_gen: v7x
topology: tpu7x:2x2x1
jax: 0.10.0
libtpu: 0.0.40
codegen_flags: <defaults>
</compile_context>

<pallas_src>
import numpy as np
import jax
import jax.numpy as jnp
from jax.experimental import pallas as pl
from jax.experimental.pallas import tpu as pltpu

# ----------------------- hyper-parameters (small, synthetic) ------------------
MAX_LEN = 3
NUM_FIELD = 23
SPARSE_FEATURE_NUMBER = 100
SPARSE_FEATURE_DIM = 8
FEATURE_SIZE = NUM_FIELD * SPARSE_FEATURE_DIM          # 184
EXPERT_NUM = 4
EXPERT_SIZE = 16
TOWER_SIZE = 8
COUNTERFACT_MODE = "DR"                                # -> gate_num = 3
GATE_NUM = 3 if COUNTERFACT_MODE == "DR" else 2
COUNTERFACTUAL_W = 0.5
GLOBAL_W = 0.5
BATCH = 8

FUSED_OUT = 128          # padded width of fused expert+gate layer (keep 128, see review)
MAX_BATCH_TILE = 512     # raised from 128: amortizes ~0.35 us/step pipeline overhead
EMB_BF16 = False         # optional ~2x on the dominant emb HBM stream; off = exact f32


# ----------------------- constant 0/1 structure matrices ----------------------
def _build_consts():
    ge = GATE_NUM * EXPERT_NUM                         # 12
    idx = np.arange(ge)
    # gmask[p, q] = 1 iff p and q belong to the same gate (4x4 blocks of ones)
    gmask = (idx[:, None] // EXPERT_NUM == idx[None, :] // EXPERT_NUM).astype(np.float32)

    # s12[k, ES*k + j] = 1 : broadcast each gate weight across its expert's 16 units
    s12 = np.zeros((ge, ge * EXPERT_SIZE), np.float32)
    for k in range(ge):
        s12[k, k * EXPERT_SIZE:(k + 1) * EXPERT_SIZE] = 1.0

    # mix[ES*(E*g+e)+j, ES*g+j] = 1 : segment-sum over experts per gate
    mix = np.zeros((ge * EXPERT_SIZE, GATE_NUM * EXPERT_SIZE), np.float32)
    for g in range(GATE_NUM):
        for e in range(EXPERT_NUM):
            r0 = EXPERT_SIZE * (EXPERT_NUM * g + e)
            c0 = EXPERT_SIZE * g
            for j in range(EXPERT_SIZE):
                mix[r0 + j, c0 + j] = 1.0

    # dmat turns per-task 2-class logits into (logit1 - logit0)
    dmat = np.zeros((2 * GATE_NUM, GATE_NUM), np.float32)
    for g in range(GATE_NUM):
        dmat[2 * g, g] = -1.0
        dmat[2 * g + 1, g] = 1.0
    return gmask, s12, mix, dmat


_GATE_MASK_NP, _GATE_BCAST_NP, _MIX_SUM_NP, _LOGIT_DIFF_NP = _build_consts()


# ------------------------------- kernel helpers --------------------------------
def _bce_with_logits(x, z):
    # element-wise F.binary_cross_entropy_with_logits (PyTorch formulation)
    return jnp.maximum(x, 0.0) - x * z + jnp.log(1.0 + jnp.exp(-jnp.abs(x)))


# --------------------------------- the kernel ----------------------------------
def escm_kernel(emb_ref, lab_ref, w1_ref, b1_ref, gmask_ref, s12_ref,
                wt_ref, bt_ref, wo_ref, bo_ref, out_ref):
    emb = emb_ref[...]                                           # [TB, F]

    # -------- fused experts + gate logits: ONE wide MXU pass --------
    h = jnp.dot(emb, w1_ref[...], preferred_element_type=jnp.float32) + b1_ref[...]
    n_exp = EXPERT_NUM * EXPERT_SIZE                             # 64
    n_gate = GATE_NUM * EXPERT_NUM                               # 12
    experts = jnp.maximum(h[:, :n_exp], 0.0)                     # [TB, 64]
    gate_logits = h[:, n_exp:n_exp + n_gate]                     # [TB, 12]

    # -------- grouped softmax over each gate's 4 expert logits --------
    m = jnp.max(gate_logits, axis=-1, keepdims=True)             # global max is a
    ex = jnp.exp(gate_logits - m)                                # valid per-group shift
    denom = jnp.dot(ex, gmask_ref[...], preferred_element_type=jnp.float32)
    gates = ex * pl.reciprocal(denom, approx=True)               # [TB, 12]

    # -------- MMoE mixture + block-diagonal towers --------
    # prod[:, 64g+16e+j] = gate[g,e] * expert[e,j]
    gate_rep = jnp.dot(gates, s12_ref[...], preferred_element_type=jnp.float32)   # [TB,192]
    experts_rep = jnp.concatenate([experts] * GATE_NUM, axis=-1)                  # [TB,192]
    prod = gate_rep * experts_rep
    tower = jnp.maximum(
        jnp.dot(prod, wt_ref[...], preferred_element_type=jnp.float32) + bt_ref[...],
        0.0)                                                                       # [TB, 24]
    # wo_ref folds block-diag tower-out weight with the logit-difference matrix,
    # so diff = logit1 - logit0 per task and sigmoid(diff) == softmax(logits)[:, 1]
    diff = jnp.dot(tower, wo_ref[...], preferred_element_type=jnp.float32) + bo_ref[...]  # [TB,3]
    p1 = jnp.clip(pl.reciprocal(1.0 + jnp.exp(-diff), approx=True), 1e-15, 1.0 - 1e-15)

    ctr_one = p1[:, 0:1]
    cvr_one = p1[:, 1:2]
    imp_out = p1[:, 2:3]
    ctcvr_one = ctr_one * cvr_one

    ctr_clk = lab_ref[:, 0:1]                                    # O
    buy = lab_ref[:, 1:2]

    # -------- per-sample loss terms (losses on probabilities, per reference) --------
    bce_ctr = _bce_with_logits(ctr_one, ctr_clk)
    bce_cvr = _bce_with_logits(cvr_one, buy)
    bce_ctcvr = _bce_with_logits(ctcvr_one, buy)
    # IPS (.detach() in the reference is forward-identical; this is forward-only)
    ips = jnp.clip(ctr_clk * pl.reciprocal(jnp.maximum(ctr_one, 1e-6), approx=True),
                   -15.0, 15.0)

    # Single merged lane-packed store:
    #   lanes 0-7  : [ctr_p1, cvr_p1, imp_p1, ctcvr_p1, 0, 0, 0, 0]
    #   lanes 8-15 : [bce_ctr, bce_cvr, imp, ips, imp*ips, imp^2*ips, bce_ctcvr, 0]
    # The global-mean coupling of the DR loss is finished in the wrapper from the
    # per-row terms (row-sum over the un-padded rows only).
    z = jnp.zeros_like(ctr_one)
    out_ref[...] = jnp.concatenate(
        [p1, ctcvr_one, z, z, z, z,
         bce_ctr, bce_cvr, imp_out, ips, imp_out * ips, imp_out * imp_out * ips,
         bce_ctcvr, z], axis=-1)


# --------------------------------- glue / wrapper -------------------------------
def _block_diag(blocks):
    r, c = blocks[0].shape
    n = len(blocks)
    rows = []
    for i, blk in enumerate(blocks):
        row = [jnp.zeros((r, c), blk.dtype) for _ in range(n)]
        row[i] = blk
        rows.append(jnp.concatenate(row, axis=1))
    return jnp.concatenate(rows, axis=0)


def _prepare_fused_weights(params):
    we, be = params["w_expert"], params["b_expert"]          # [E,F,ES], [E,ES]
    wg, bg = params["w_gate"], params["b_gate"]              # [G,F,E],  [G,E]
    wt, bt = params["w_tower"], params["b_tower"]            # [G,ES,TS],[G,TS]
    wo, bo = params["w_tower_out"], params["b_tower_out"]    # [G,TS,2], [G,2]

    n_exp = EXPERT_NUM * EXPERT_SIZE
    n_gate = GATE_NUM * EXPERT_NUM
    pad = FUSED_OUT - (n_exp + n_gate)

    # fused expert+gate first layer: column 16e+j = expert e unit j,
    # column 64 + 4g+e = gate g logit for expert e
    w_exp = jnp.transpose(we, (1, 0, 2)).reshape(FEATURE_SIZE, n_exp)
    w_gt = jnp.transpose(wg, (1, 0, 2)).reshape(FEATURE_SIZE, n_gate)
    w1 = jnp.concatenate(
        [w_exp, w_gt, jnp.zeros((FEATURE_SIZE, pad), jnp.float32)], axis=1)
    b1 = jnp.concatenate(
        [be.reshape(-1), bg.reshape(-1), jnp.zeros((pad,), jnp.float32)])[None, :]

    # block-diagonal towers, with the mixing segment-sum matrix folded into the
    # tower weight and the 2-class logit-difference folded into the output weight
    wt_bd = _block_diag([wt[g] for g in range(GATE_NUM)])    # [48, 24]
    bt_bd = bt.reshape(1, GATE_NUM * TOWER_SIZE)             # [1, 24]
    wo_bd = _block_diag([wo[g] for g in range(GATE_NUM)])    # [24, 6]
    bo_bd = bo.reshape(1, GATE_NUM * 2)                      # [1, 6]

    wt_eff = jnp.asarray(_MIX_SUM_NP) @ wt_bd                # [192, 24]
    wo_eff = wo_bd @ jnp.asarray(_LOGIT_DIFF_NP)             # [24, 3]
    bo_eff = bo_bd @ jnp.asarray(_LOGIT_DIFF_NP)             # [1, 3]
    return w1, b1, wt_eff, bt_bd, wo_eff, bo_eff


def _rank_auc(score, labels):
    # TODO(synk): compute_auc is not defined in the reference module; use a
    # sort/rank Mann-Whitney AUC stand-in (O(B log B), ties broken by order --
    # sigmoid scores are effectively tie-free).
    y = labels[:, 0].astype(jnp.float32)
    n = score.shape[0]
    ranks = (jnp.argsort(jnp.argsort(score)) + 1).astype(jnp.float32)
    n_pos = jnp.sum(y)
    n_neg = jnp.float32(n) - n_pos
    sum_rank_pos = jnp.sum(ranks * y)
    auc = (sum_rank_pos - n_pos * (n_pos + 1.0) * 0.5) / jnp.maximum(n_pos * n_neg, 1.0)
    return jnp.where((n_pos > 0) & (n_neg > 0), auc, jnp.float32(0.5))


def escm_static_model_forward(sparse_ids, ctr_clk, ctcvr_buy, params):
    B = sparse_ids.shape[0]

    # ---- glue: sparse-id embedding gather + sum-pool over max_len ----
    # TODO(synk): the 3.2 KB table lookup could also be fused into the kernel;
    # kept as XLA glue because the data-dependent gather has no robust
    # reshape-free Mosaic lowering at these shapes.
    field_emb = jnp.take(params["embedding"], sparse_ids, axis=0)       # [B,NF,L,D]
    concat_emb = jnp.sum(field_emb, axis=2).reshape(B, FEATURE_SIZE)    # [B,184]

    w1, b1, wt_eff, bt_bd, wo_eff, bo_eff = _prepare_fused_weights(params)
    gmask = jnp.asarray(_GATE_MASK_NP)
    s12 = jnp.asarray(_GATE_BCAST_NP)

    # one lane-packed label stream (cols 0-1 used) instead of two (tb,1) streams
    labels = jnp.concatenate(
        [ctr_clk.astype(jnp.float32), ctcvr_buy.astype(jnp.float32),
         jnp.zeros((B, 6), jnp.float32)], axis=1)                        # [B, 8]

    # ---- batch tiling: large tile, zero-pad ragged B (pad rows sliced off
    # before the loss row-sum so they never contaminate the means) ----
    if B <= MAX_BATCH_TILE:
        tb, b_pad = B, B
    else:
        tb = MAX_BATCH_TILE
        b_pad = (-(-B // tb)) * tb
    nt = b_pad // tb
    if b_pad != B:
        concat_emb = jnp.pad(concat_emb, ((0, b_pad - B), (0, 0)))
        labels = jnp.pad(labels, ((0, b_pad - B), (0, 0)))

    if EMB_BF16:
        concat_emb = concat_emb.astype(jnp.bfloat16)
        w1 = w1.astype(jnp.bfloat16)

    batch_spec = lambda shape: pl.BlockSpec(shape, lambda i: (i, 0))
    weight_spec = lambda shape: pl.BlockSpec(shape, lambda i: (0, 0))

    n_gate = GATE_NUM * EXPERT_NUM
    n_mix = n_gate * EXPERT_SIZE

    # batch grid: weights stay VMEM-resident (constant index_map); batch axis is
    # "parallel" so v7x's two TensorCores split it when nt >= 2 (no-op on v5e/v6e).
    out = pl.pallas_call(
        escm_kernel,
        out_shape=jax.ShapeDtypeStruct((b_pad, 16), jnp.float32),
        grid=(nt,),
        in_specs=[
            batch_spec((tb, FEATURE_SIZE)),                    # concat_emb
            batch_spec((tb, 8)),                               # packed labels
            weight_spec((FEATURE_SIZE, FUSED_OUT)),            # fused expert+gate W
            weight_spec((1, FUSED_OUT)),                       # fused bias
            weight_spec((n_gate, n_gate)),                     # gate group mask
            weight_spec((n_gate, n_mix)),                      # gate broadcast matrix
            weight_spec((n_mix, GATE_NUM * TOWER_SIZE)),       # folded tower W
            weight_spec((1, GATE_NUM * TOWER_SIZE)),           # tower bias
            weight_spec((GATE_NUM * TOWER_SIZE, GATE_NUM)),    # folded tower-out W
            weight_spec((1, GATE_NUM)),                        # folded tower-out bias
        ],
        out_specs=batch_spec((tb, 16)),
        compiler_params=pltpu.CompilerParams(dimension_semantics=("parallel",)),
    )(concat_emb, labels, w1, b1, gmask, s12, wt_eff, bt_bd, wo_eff, bo_eff)

    probs = out[:B, :8]

    # ---- finalize losses (global-mean coupling of the DR term; ~15 scalar flops) ----
    # mean[imp + (Lc-imp)*IPS + (Lc-imp)^2*IPS]
    #   = (S_imp + Lc*S_ips - S_imp_ips + Lc^2*S_ips - 2*Lc*S_imp_ips + S_imp2_ips) / B
    s = jnp.sum(out[:B, 8:16], axis=0)
    bf = jnp.float32(B)
    loss_ctr = s[0] / bf
    lc = s[1] / bf                                             # mean BCE(cvr) over batch
    loss_cvr_dr = (s[2] + lc * s[3] - s[4]
                   + lc * lc * s[3] - 2.0 * lc * s[4] + s[5]) / bf
    loss_ctcvr = s[6] / bf
    cost = loss_ctr + loss_cvr_dr * COUNTERFACTUAL_W + loss_ctcvr * GLOBAL_W

    return {
        "cost": cost,
        "auc_ctr": _rank_auc(probs[:, 0], ctr_clk),
        "auc_cvr": _rank_auc(probs[:, 1], ctcvr_buy),
        "auc_ctcvr": _rank_auc(probs[:, 3], ctcvr_buy),
    }


def init_params(key):
    ks = jax.random.split(key, 9)
    s = 0.1
    n = lambda k, shape: (jax.random.normal(k, shape, jnp.float32) * s)
    return {
        "embedding":   n(ks[0], (SPARSE_FEATURE_NUMBER, SPARSE_FEATURE_DIM)),
        "w_expert":    n(ks[1], (EXPERT_NUM, FEATURE_SIZE, EXPERT_SIZE)),
        "b_expert":    n(ks[2], (EXPERT_NUM, EXPERT_SIZE)),
        "w_gate":      n(ks[3], (GATE_NUM, FEATURE_SIZE, EXPERT_NUM)),
        "b_gate":      n(ks[4], (GATE_NUM, EXPERT_NUM)),
        "w_tower":     n(ks[5], (GATE_NUM, EXPERT_SIZE, TOWER_SIZE)),
        "b_tower":     n(ks[6], (GATE_NUM, TOWER_SIZE)),
        "w_tower_out": n(ks[7], (GATE_NUM, TOWER_SIZE, 2)),
        "b_tower_out": n(ks[8], (GATE_NUM, 2)),
    }


if __name__ == "__main__":
    key = jax.random.PRNGKey(0)
    pkey, k_ids, k_ctr, k_cvr = jax.random.split(key, 4)
    params = init_params(pkey)

    def make_inputs(b):
        ids = jax.random.randint(
            k_ids, (b, NUM_FIELD, MAX_LEN), 0, SPARSE_FEATURE_NUMBER, dtype=jnp.int32)
        ctr = jax.random.bernoulli(k_ctr, 0.5, (b, 1)).astype(jnp.int32)
        buy = jax.random.bernoulli(k_cvr, 0.5, (b, 1)).astype(jnp.int32) * ctr
        return ids, ctr, buy

    fwd = jax.jit(lambda ids, a, b: escm_static_model_forward(ids, a, b, params))

    # small-batch path (single tile, nt = 1)
    sparse_ids, ctr_clk, ctcvr_buy = make_inputs(BATCH)
    fetch = fwd(sparse_ids, ctr_clk, ctcvr_buy)
    jax.block_until_ready(fetch)
    assert jnp.isfinite(fetch["cost"])

    # multi-tile ragged path (B=600 -> padded to 1024, nt = 2, pad rows masked by slicing)
    ids2, ctr2, buy2 = make_inputs(600)
    fetch2 = fwd(ids2, ctr2, buy2)
    jax.block_until_ready(fetch2)
    assert jnp.isfinite(fetch2["cost"])

    print("KERNEL_OK")
</pallas_src>

<mosaic_0001>
module attributes {stable_mosaic.version = 11 : i64} {
  func.func @escm_kernel(%arg0: i32, %arg1: memref<8x184xf32, #tpu.memory_space<vmem>>, %arg2: memref<8x8xf32, #tpu.memory_space<vmem>>, %arg3: memref<184x128xf32, #tpu.memory_space<vmem>>, %arg4: memref<1x128xf32, #tpu.memory_space<vmem>>, %arg5: memref<12x12xf32, #tpu.memory_space<vmem>>, %arg6: memref<12x192xf32, #tpu.memory_space<vmem>>, %arg7: memref<192x24xf32, #tpu.memory_space<vmem>>, %arg8: memref<1x24xf32, #tpu.memory_space<vmem>>, %arg9: memref<24x3xf32, #tpu.memory_space<vmem>>, %arg10: memref<1x3xf32, #tpu.memory_space<vmem>>, %arg11: memref<8x16xf32, #tpu.memory_space<vmem>>) attributes {dimension_semantics = [#tpu.dimension_semantics<parallel>], iteration_bounds = array<i64: 1>, scalar_prefetch = 0 : i64, scratch_operands = 0 : i64, tpu.core_type = #tpu.core_type<tc>, window_params = [{transform_indices = @transform_0, window_bounds = array<i64: 8, 184>}, {transform_indices = @transform_1, window_bounds = array<i64: 8, 8>}, {pipeline_mode = #tpu.pipeline_mode<synchronous>, transform_indices = @transform_2, window_bounds = array<i64: 184, 128>}, {pipeline_mode = #tpu.pipeline_mode<synchronous>, transform_indices = @transform_3, window_bounds = array<i64: 1, 128>}, {pipeline_mode = #tpu.pipeline_mode<synchronous>, transform_indices = @transform_4, window_bounds = array<i64: 12, 12>}, {pipeline_mode = #tpu.pipeline_mode<synchronous>, transform_indices = @transform_5, window_bounds = array<i64: 12, 192>}, {pipeline_mode = #tpu.pipeline_mode<synchronous>, transform_indices = @transform_6, window_bounds = array<i64: 192, 24>}, {pipeline_mode = #tpu.pipeline_mode<synchronous>, transform_indices = @transform_7, window_bounds = array<i64: 1, 24>}, {pipeline_mode = #tpu.pipeline_mode<synchronous>, transform_indices = @transform_8, window_bounds = array<i64: 24, 3>}, {pipeline_mode = #tpu.pipeline_mode<synchronous>, transform_indices = @transform_9, window_bounds = array<i64: 1, 3>}, {transform_indices = @transform_10, window_bounds = array<i64: 8, 16>}]} {
    %c0 = arith.constant 0 : index
    %c0_0 = arith.constant 0 : index
    %0 = vector.load %arg1[%c0, %c0_0] : memref<8x184xf32, #tpu.memory_space<vmem>>, vector<8x184xf32>
    %c0_1 = arith.constant 0 : index
    %c0_2 = arith.constant 0 : index
    %1 = vector.load %arg3[%c0_1, %c0_2] : memref<184x128xf32, #tpu.memory_space<vmem>>, vector<184x128xf32>
    %cst = arith.constant dense<0.000000e+00> : vector<8x128xf32>
    %2 = tpu.matmul %0, %1, %cst {dimension_numbers = #tpu.dot_dimension_numbers<[1], [0], [0], [1], [0, 0, 1, 1], [], []>} : vector<8x184xf32>, vector<184x128xf32>, vector<8x128xf32> -> vector<8x128xf32>
    %c0_3 = arith.constant 0 : index
    %c0_4 = arith.constant 0 : index
    %3 = vector.load %arg4[%c0_3, %c0_4] : memref<1x128xf32, #tpu.memory_space<vmem>>, vector<1x128xf32>
    %4 = vector.broadcast %3 : vector<1x128xf32> to vector<8x128xf32>
    %5 = arith.addf %2, %4 : vector<8x128xf32>
    %6 = vector.extract_strided_slice %5 {offsets = [0, 0], sizes = [8, 64], strides = [1, 1]} : vector<8x128xf32> to vector<8x64xf32>
    %cst_5 = arith.constant 0.000000e+00 : f32
    %7 = vector.broadcast %cst_5 : f32 to vector<8x64xf32>
    %8 = arith.maximumf %6, %7 : vector<8x64xf32>
    %9 = vector.extract_strided_slice %5 {offsets = [0, 64], sizes = [8, 12], strides = [1, 1]} : vector<8x128xf32> to vector<8x12xf32>
    %cst_6 = arith.constant dense<0xFF800000> : vector<8xf32>
    %10 = vector.multi_reduction <maximumf>, %9, %cst_6 [1] : vector<8x12xf32> to vector<8xf32>
    %11 = vector.shape_cast %10 : vector<8xf32> to vector<8x1xf32>
    %12 = vector.broadcast %11 : vector<8x1xf32> to vector<8x12xf32>
    %13 = arith.subf %9, %12 : vector<8x12xf32>
    %14 = math.exp %13 : vector<8x12xf32>
    %c0_7 = arith.constant 0 : index
    %c0_8 = arith.constant 0 : index
    %15 = vector.load %arg5[%c0_7, %c0_8] : memref<12x12xf32, #tpu.memory_space<vmem>>, vector<12x12xf32>
    %cst_9 = arith.constant dense<0.000000e+00> : vector<8x12xf32>
    %16 = tpu.matmul %14, %15, %cst_9 {dimension_numbers = #tpu.dot_dimension_numbers<[1], [0], [0], [1], [0, 0, 1, 1], [], []>} : vector<8x12xf32>, vector<12x12xf32>, vector<8x12xf32> -> vector<8x12xf32>
    %17 = tpu.reciprocal %16 {approx = true} : vector<8x12xf32> -> vector<8x12xf32>
    %18 = arith.mulf %14, %17 : vector<8x12xf32>
    %c0_10 = arith.constant 0 : index
    %c0_11 = arith.constant 0 : index
    %19 = vector.load %arg6[%c0_10, %c0_11] : memref<12x192xf32, #tpu.memory_space<vmem>>, vector<12x192xf32>
    %cst_12 = arith.constant dense<0.000000e+00> : vector<8x192xf32>
    %20 = tpu.matmul %18, %19, %cst_12 {dimension_numbers = #tpu.dot_dimension_numbers<[1], [0], [0], [1], [0, 0, 1, 1], [], []>} : vector<8x12xf32>, vector<12x192xf32>, vector<8x192xf32> -> vector<8x192xf32>
    %21 = tpu.concatenate %8, %8, %8 in 1 : vector<8x64xf32>, vector<8x64xf32>, vector<8x64xf32> -> vector<8x192xf32>
    %22 = arith.mulf %20, %21 : vector<8x192xf32>
    %c0_13 = arith.constant 0 : index
    %c0_14 = arith.constant 0 : index
    %23 = vector.load %arg7[%c0_13, %c0_14] : memref<192x24xf32, #tpu.memory_space<vmem>>, vector<192x24xf32>
    %cst_15 = arith.constant dense<0.000000e+00> : vector<8x24xf32>
    %24 = tpu.matmul %22, %23, %cst_15 {dimension_numbers = #tpu.dot_dimension_numbers<[1], [0], [0], [1], [0, 0, 1, 1], [], []>} : vector<8x192xf32>, vector<192x24xf32>, vector<8x24xf32> -> vector<8x24xf32>
    %c0_16 = arith.constant 0 : index
    %c0_17 = arith.constant 0 : index
    %25 = vector.load %arg8[%c0_16, %c0_17] : memref<1x24xf32, #tpu.memory_space<vmem>>, vector<1x24xf32>
    %26 = vector.broadcast %25 : vector<1x24xf32> to vector<8x24xf32>
    %27 = arith.addf %24, %26 : vector<8x24xf32>
    %cst_18 = arith.constant 0.000000e+00 : f32
    %28 = vector.broadcast %cst_18 : f32 to vector<8x24xf32>
    %29 = arith.maximumf %27, %28 : vector<8x24xf32>
    %c0_19 = arith.constant 0 : index
    %c0_20 = arith.constant 0 : index
    %30 = vector.load %arg9[%c0_19, %c0_20] : memref<24x3xf32, #tpu.memory_space<vmem>>, vector<24x3xf32>
    %cst_21 = arith.constant dense<0.000000e+00> : vector<8x3xf32>
    %31 = tpu.matmul %29, %30, %cst_21 {dimension_numbers = #tpu.dot_dimension_numbers<[1], [0], [0], [1], [0, 0, 1, 1], [], []>} : vector<8x24xf32>, vector<24x3xf32>, vector<8x3xf32> -> vector<8x3xf32>
    %c0_22 = arith.constant 0 : index
    %c0_23 = arith.constant 0 : index
    %32 = vector.load %arg10[%c0_22, %c0_23] : memref<1x3xf32, #tpu.memory_space<vmem>>, vector<1x3xf32>
    %33 = vector.broadcast %32 : vector<1x3xf32> to vector<8x3xf32>
    %34 = arith.addf %31, %33 : vector<8x3xf32>
    %cst_24 = arith.constant 0.000000e+00 : f32
    %35 = vector.broadcast %cst_24 : f32 to vector<8x3xf32>
    %36 = arith.subf %35, %34 : vector<8x3xf32>
    %37 = math.exp %36 : vector<8x3xf32>
    %cst_25 = arith.constant 1.000000e+00 : f32
    %38 = vector.broadcast %cst_25 : f32 to vector<8x3xf32>
    %39 = arith.addf %38, %37 : vector<8x3xf32>
    %40 = tpu.reciprocal %39 {approx = true} : vector<8x3xf32> -> vector<8x3xf32>
    %cst_26 = arith.constant 1.000000e-15 : f32
    %cst_27 = arith.constant 1.000000e+00 : f32
    %41 = vector.broadcast %cst_26 : f32 to vector<8x3xf32>
    %42 = arith.maximumf %41, %40 : vector<8x3xf32>
    %43 = vector.broadcast %cst_27 : f32 to vector<8x3xf32>
    %44 = arith.minimumf %43, %42 : vector<8x3xf32>
    %45 = vector.extract_strided_slice %44 {offsets = [0, 0], sizes = [8, 1], strides = [1, 1]} : vector<8x3xf32> to vector<8x1xf32>
    %46 = vector.extract_strided_slice %44 {offsets = [0, 1], sizes = [8, 1], strides = [1, 1]} : vector<8x3xf32> to vector<8x1xf32>
    %47 = vector.extract_strided_slice %44 {offsets = [0, 2], sizes = [8, 1], strides = [1, 1]} : vector<8x3xf32> to vector<8x1xf32>
    %48 = arith.mulf %45, %46 : vector<8x1xf32>
    %c0_28 = arith.constant 0 : index
    %c0_29 = arith.constant 0 : index
    %49 = vector.load %arg2[%c0_28, %c0_29] : memref<8x8xf32, #tpu.memory_space<vmem>>, vector<8x1xf32>
    %c0_30 = arith.constant 0 : index
    %c1 = arith.constant 1 : index
    %50 = vector.load %arg2[%c0_30, %c1] : memref<8x8xf32, #tpu.memory_space<vmem>>, vector<8x1xf32>
    %cst_31 = arith.constant 0.000000e+00 : f32
    %51 = vector.broadcast %cst_31 : f32 to vector<8x1xf32>
    %52 = arith.maximumf %45, %51 : vector<8x1xf32>
    %53 = arith.mulf %45, %49 : vector<8x1xf32>
    %54 = arith.subf %52, %53 : vector<8x1xf32>
    %55 = math.absf %45 : vector<8x1xf32>
    %cst_32 = arith.constant 0.000000e+00 : f32
    %56 = vector.broadcast %cst_32 : f32 to vector<8x1xf32>
    %57 = arith.subf %56, %55 : vector<8x1xf32>
    %58 = math.exp %57 : vector<8x1xf32>
    %cst_33 = arith.constant 1.000000e+00 : f32
    %59 = vector.broadcast %cst_33 : f32 to vector<8x1xf32>
    %60 = arith.addf %59, %58 : vector<8x1xf32>
    %61 = math.log %60 : vector<8x1xf32>
    %62 = arith.addf %54, %61 : vector<8x1xf32>
    %cst_34 = arith.constant 0.000000e+00 : f32
    %63 = vector.broadcast %cst_34 : f32 to vector<8x1xf32>
    %64 = arith.maximumf %46, %63 : vector<8x1xf32>
    %65 = arith.mulf %46, %50 : vector<8x1xf32>
    %66 = arith.subf %64, %65 : vector<8x1xf32>
    %67 = math.absf %46 : vector<8x1xf32>
    %cst_35 = arith.constant 0.000000e+00 : f32
    %68 = vector.broadcast %cst_35 : f32 to vector<8x1xf32>
    %69 = arith.subf %68, %67 : vector<8x1xf32>
    %70 = math.exp %69 : vector<8x1xf32>
    %cst_36 = arith.constant 1.000000e+00 : f32
    %71 = vector.broadcast %cst_36 : f32 to vector<8x1xf32>
    %72 = arith.addf %71, %70 : vector<8x1xf32>
    %73 = math.log %72 : vector<8x1xf32>
    %74 = arith.addf %66, %73 : vector<8x1xf32>
    %cst_37 = arith.constant 0.000000e+00 : f32
    %75 = vector.broadcast %cst_37 : f32 to vector<8x1xf32>
    %76 = arith.maximumf %48, %75 : vector<8x1xf32>
    %77 = arith.mulf %48, %50 : vector<8x1xf32>
    %78 = arith.subf %76, %77 : vector<8x1xf32>
    %79 = math.absf %48 : vector<8x1xf32>
    %cst_38 = arith.constant 0.000000e+00 : f32
    %80 = vector.broadcast %cst_38 : f32 to vector<8x1xf32>
    %81 = arith.subf %80, %79 : vector<8x1xf32>
    %82 = math.exp %81 : vector<8x1xf32>
    %cst_39 = arith.constant 1.000000e+00 : f32
    %83 = vector.broadcast %cst_39 : f32 to vector<8x1xf32>
    %84 = arith.addf %83, %82 : vector<8x1xf32>
    %85 = math.log %84 : vector<8x1xf32>
    %86 = arith.addf %78, %85 : vector<8x1xf32>
    %cst_40 = arith.constant 9.99999997E-7 : f32
    %87 = vector.broadcast %cst_40 : f32 to vector<8x1xf32>
    %88 = arith.maximumf %45, %87 : vector<8x1xf32>
    %89 = tpu.reciprocal %88 {approx = true} : vector<8x1xf32> -> vector<8x1xf32>
    %90 = arith.mulf %49, %89 : vector<8x1xf32>
    %cst_41 = arith.constant -1.500000e+01 : f32
    %cst_42 = arith.constant 1.500000e+01 : f32
    %91 = vector.broadcast %cst_41 : f32 to vector<8x1xf32>
    %92 = arith.maximumf %91, %90 : vector<8x1xf32>
    %93 = vector.broadcast %cst_42 : f32 to vector<8x1xf32>
    %94 = arith.minimumf %93, %92 : vector<8x1xf32>
    %cst_43 = arith.constant 0.000000e+00 : f32
    %95 = vector.broadcast %cst_43 : f32 to vector<8x1xf32>
    %96 = arith.mulf %47, %94 : vector<8x1xf32>
    %97 = arith.mulf %47, %47 : vector<8x1xf32>
    %98 = arith.mulf %97, %94 : vector<8x1xf32>
    %99 = tpu.concatenate %44, %48, %95, %95, %95, %95, %62, %74, %47, %94, %96, %98, %86, %95 in 1 : vector<8x3xf32>, vector<8x1xf32>, vector<8x1xf32>, vector<8x1xf32>, vector<8x1xf32>, vector<8x1xf32>, vector<8x1xf32>, vector<8x1xf32>, vector<8x1xf32>, vector<8x1xf32>, vector<8x1xf32>, vector<8x1xf32>, vector<8x1xf32>, vector<8x1xf32> -> vector<8x16xf32>
    %c0_44 = arith.constant 0 : index
    %c0_45 = arith.constant 0 : index
    %100 = vector.load %arg11[%c0_44, %c0_45] : memref<8x16xf32, #tpu.memory_space<vmem>>, vector<8x16xf32>
    tpu.vector_store %arg11[%c0_44, %c0_45], %99 {strides = array<i32>} : memref<8x16xf32, #tpu.memory_space<vmem>>, vector<8x16xf32>,
    return
  }
  func.func @transform_0(%arg0: i32) -> (i32, i32) {
    %c0_i32 = arith.constant 0 : i32
    %c0_i32_0 = arith.constant 0 : i32
    return %arg0, %c0_i32 : i32, i32
  }
  func.func @transform_1(%arg0: i32) -> (i32, i32) {
    %c0_i32 = arith.constant 0 : i32
    %c0_i32_0 = arith.constant 0 : i32
    return %arg0, %c0_i32 : i32, i32
  }
  func.func @transform_2(%arg0: i32) -> (i32, i32) {
    %c0_i32 = arith.constant 0 : i32
    %c0_i32_0 = arith.constant 0 : i32
    %c0_i32_1 = arith.constant 0 : i32
    return %c0_i32, %c0_i32_0 : i32, i32
  }
  func.func @transform_3(%arg0: i32) -> (i32, i32) {
    %c0_i32 = arith.constant 0 : i32
    %c0_i32_0 = arith.constant 0 : i32
    %c0_i32_1 = arith.constant 0 : i32
    return %c0_i32, %c0_i32_0 : i32, i32
  }
  func.func @transform_4(%arg0: i32) -> (i32, i32) {
    %c0_i32 = arith.constant 0 : i32
    %c0_i32_0 = arith.constant 0 : i32
    %c0_i32_1 = arith.constant 0 : i32
    return %c0_i32, %c0_i32_0 : i32, i32
  }
  func.func @transform_5(%arg0: i32) -> (i32, i32) {
    %c0_i32 = arith.constant 0 : i32
    %c0_i32_0 = arith.constant 0 : i32
    %c0_i32_1 = arith.constant 0 : i32
    return %c0_i32, %c0_i32_0 : i32, i32
  }
  func.func @transform_6(%arg0: i32) -> (i32, i32) {
    %c0_i32 = arith.constant 0 : i32
    %c0_i32_0 = arith.constant 0 : i32
    %c0_i32_1 = arith.constant 0 : i32
    return %c0_i32, %c0_i32_0 : i32, i32
  }
  func.func @transform_7(%arg0: i32) -> (i32, i32) {
    %c0_i32 = arith.constant 0 : i32
    %c0_i32_0 = arith.constant 0 : i32
    %c0_i32_1 = arith.constant 0 : i32
    return %c0_i32, %c0_i32_0 : i32, i32
  }
  func.func @transform_8(%arg0: i32) -> (i32, i32) {
    %c0_i32 = arith.constant 0 : i32
    %c0_i32_0 = arith.constant 0 : i32
    %c0_i32_1 = arith.constant 0 : i32
    return %c0_i32, %c0_i32_0 : i32, i32
  }
  func.func @transform_9(%arg0: i32) -> (i32, i32) {
    %c0_i32 = arith.constant 0 : i32
    %c0_i32_0 = arith.constant 0 : i32
    %c0_i32_1 = arith.constant 0 : i32
    return %c0_i32, %c0_i32_0 : i32, i32
  }
  func.func @transform_10(%arg0: i32) -> (i32, i32) {
    %c0_i32 = arith.constant 0 : i32
    %c0_i32_0 = arith.constant 0 : i32
    return %arg0, %c0_i32 : i32, i32
  }
}

</mosaic_0001>

<llo_original>
// kernel: _lambda_.1
$region0: #{_lambda_.1}
  #allocation0 [shape = 'u32[]', space=smem, size = 0x4, offset = 0x4, fixed_abs, tag = 'smem constant byte address 0x4 - core index']
  #allocation1 [shape = 'u32[144,128]{1,0:T(1,128)}', space=vmem, size = 0x12000, scoped, tag = 'internal scratch']
  %s0 = inlined_call_operand.vmem [shape: f32[8,184], index: 0, kind: input, shape index: {}]
  %s1 = inlined_call_operand.vmem [shape: f32[8,8], index: 1, kind: input, shape index: {}]
  %s2 = inlined_call_operand.vmem [shape: f32[184,128], index: 2, kind: input, shape index: {}]
  %s3 = inlined_call_operand.vmem [shape: f32[1,128], index: 3, kind: input, shape index: {}]
  %s4 = inlined_call_operand.vmem [shape: f32[12,12], index: 4, kind: input, shape index: {}]
  %s5 = inlined_call_operand.vmem [shape: f32[12,192], index: 5, kind: input, shape index: {}]
  %s6 = inlined_call_operand.vmem [shape: f32[192,24], index: 6, kind: input, shape index: {}]
  %s7 = inlined_call_operand.vmem [shape: f32[1,24], index: 7, kind: input, shape index: {}]
  %s8 = inlined_call_operand.vmem [shape: f32[24,3], index: 8, kind: input, shape index: {}]
  %s9 = inlined_call_operand.vmem [shape: f32[1,3], index: 9, kind: input, shape index: {}]
  %s10 = inlined_call_operand.vmem [shape: f32[8,16], index: 10, kind: output, shape index: {}]
  %s11 = sld [smem:[#allocation0]]
  $region50: #{_lambda_.1} parent=0
    _
  %s13 = ssub.s32 1, %s11
  %s14 = scalar_select 0, %s13, %s11
  // Predicated region
  $region2: #{_lambda_.1} parent=0 // pred_check
    _
  $region3: #{_lambda_.1} parent=0 // pred_check_branch
    %16 = sbr.rel (0) target = $region5
  $region4: #{_lambda_.1} parent=0 // pred_region
    _
  $region5: #{_lambda_.1} parent=0 // pred_fallthru
    _
  // Predicated region
  $region6: #{_lambda_.1} parent=0 // pred_check
    _
  $region7: #{_lambda_.1} parent=0 // pred_check_branch
    %18 = sbr.rel (0) target = $region9
  $region8: #{_lambda_.1} parent=0 // pred_region
    _
  $region9: #{_lambda_.1} parent=0 // pred_fallthru
    _
  // Predicated region
  $region10: #{_lambda_.1} parent=0 // pred_check
    _
  $region11: #{_lambda_.1} parent=0 // pred_check_branch
    %20 = sbr.rel (0) target = $region13
  $region12: #{_lambda_.1} parent=0 // pred_region
    _
  $region13: #{_lambda_.1} parent=0 // pred_fallthru
    _
  // Predicated region
  $region14: #{_lambda_.1} parent=0 // pred_check
    _
  $region15: #{_lambda_.1} parent=0 // pred_check_branch
    %22 = sbr.rel (0) target = $region17
  $region16: #{_lambda_.1} parent=0 // pred_region
    _
  $region17: #{_lambda_.1} parent=0 // pred_fallthru
    _
  // Predicated region
  $region18: #{_lambda_.1} parent=0 // pred_check
    _
  $region19: #{_lambda_.1} parent=0 // pred_check_branch
    %24 = sbr.rel (0) target = $region21
  $region20: #{_lambda_.1} parent=0 // pred_region
    _
  $region21: #{_lambda_.1} parent=0 // pred_fallthru
    _
  // Predicated region
  $region22: #{_lambda_.1} parent=0 // pred_check
    _
  $region23: #{_lambda_.1} parent=0 // pred_check_branch
    %26 = sbr.rel (0) target = $region25
  $region24: #{_lambda_.1} parent=0 // pred_region
    _
  $region25: #{_lambda_.1} parent=0 // pred_fallthru
    _
  // Predicated region
  $region26: #{_lambda_.1} parent=0 // pred_check
    _
  $region27: #{_lambda_.1} parent=0 // pred_check_branch
    %28 = sbr.rel (0) target = $region29
  $region28: #{_lambda_.1} parent=0 // pred_region
    _
  $region29: #{_lambda_.1} parent=0 // pred_fallthru
    _
  // Predicated region
  $region30: #{_lambda_.1} parent=0 // pred_check
    _
  $region31: #{_lambda_.1} parent=0 // pred_check_branch
    %30 = sbr.rel (0) target = $region33
  $region32: #{_lambda_.1} parent=0 // pred_region
    _
  $region33: #{_lambda_.1} parent=0 // pred_fallthru
    _
  // Predicated region
  $region34: #{_lambda_.1} parent=0 // pred_check
    _
  $region35: #{_lambda_.1} parent=0 // pred_check_branch
    %32 = sbr.rel (0) target = $region37
  $region36: #{_lambda_.1} parent=0 // pred_region
    _
  $region37: #{_lambda_.1} parent=0 // pred_fallthru
    _
  // Predicated region
  $region38: #{_lambda_.1} parent=0 // pred_check
    _
  $region39: #{_lambda_.1} parent=0 // pred_check_branch
    %34 = sbr.rel (0) target = $region41
  $region40: #{_lambda_.1} parent=0 // pred_region
    _
  $region41: #{_lambda_.1} parent=0 // pred_fallthru
    _
  %v35 = vld [vmem:[%s0] sm:$0xff]
  %v36 = vld [vmem:[%s0 + $0x8] sm:$0xff]
  %v37 = vld [vmem:[%s2] sm:$0xff]
  %v38 = vld [vmem:[%s2 + $0x8] sm:$0xff]
  %v39 = vld [vmem:[%s2 + $0x10] sm:$0xff]
  %v40 = vld [vmem:[%s2 + $0x18] sm:$0xff]
  %v41 = vld [vmem:[%s2 + $0x20] sm:$0xff]
  %v42 = vld [vmem:[%s2 + $0x28] sm:$0xff]
  %v43 = vld [vmem:[%s2 + $0x30] sm:$0xff]
  %v44 = vld [vmem:[%s2 + $0x38] sm:$0xff]
  %v45 = vld [vmem:[%s2 + $0x40] sm:$0xff]
  %v46 = vld [vmem:[%s2 + $0x48] sm:$0xff]
  %v47 = vld [vmem:[%s2 + $0x50] sm:$0xff]
  %v48 = vld [vmem:[%s2 + $0x58] sm:$0xff]
  %v49 = vld [vmem:[%s2 + $0x60] sm:$0xff]
  %v50 = vld [vmem:[%s2 + $0x68] sm:$0xff]
  %v51 = vld [vmem:[%s2 + $0x70] sm:$0xff]
  %v52 = vld [vmem:[%s2 + $0x78] sm:$0xff]
  %v53 = vld [vmem:[%s2 + $0x80] sm:$0xff]
  %v54 = vld [vmem:[%s2 + $0x88] sm:$0xff]
  %v55 = vld [vmem:[%s2 + $0x90] sm:$0xff]
  %v56 = vld [vmem:[%s2 + $0x98] sm:$0xff]
  %v57 = vld [vmem:[%s2 + $0xa0] sm:$0xff]
  %v58 = vld [vmem:[%s2 + $0xa8] sm:$0xff]
  %v59 = vld [vmem:[%s2 + $0xb0] sm:$0xff]
  %v60 = vld [vmem:[%s3] sm:$0x1]
  %v62 = vlaneseq
  %v63 = vshrl.u32 %v62, 7
  %v64 = vsub.s32 0, %v63
  %v65 = vrot.slane %v60, %v64
  %vm67 = vcmask 457728
  %v69 = vsel %vm67, %v36, 0
  %71 = vmatprep.subr.mxu0 0.0
  %72 = vmatpush1.msra.mxu0 %v37
  %73 = vmatprep.subr.mxu0 0.0
  %74 = vmatpush1.msra.mxu0 %v38
  %75 = vmatprep.subr.mxu0 0.0
  %76 = vmatpush1.msra.mxu0 %v39
  %77 = vmatprep.subr.mxu0 0.0
  %78 = vmatpush1.msra.mxu0 %v40
  %79 = vmatprep.subr.mxu0 0.0
  %80 = vmatpush1.msra.mxu0 %v41
  %81 = vmatprep.subr.mxu0 0.0
  %82 = vmatpush1.msra.mxu0 %v42
  %83 = vmatprep.subr.mxu0 0.0
  %84 = vmatpush1.msra.mxu0 %v43
  %85 = vmatprep.subr.mxu0 0.0
  %86 = vmatpush1.msra.mxu0 %v44
  %87 = vmatprep.subr.mxu0 0.0
  %88 = vmatpush1.msra.mxu0 %v45
  %89 = vmatprep.subr.mxu0 0.0
  %90 = vmatpush1.msra.mxu0 %v46
  %91 = vmatprep.subr.mxu0 0.0
  %92 = vmatpush1.msra.mxu0 %v47
  %93 = vmatprep.subr.mxu0 0.0
  %94 = vmatpush1.msra.mxu0 %v48
  %95 = vmatprep.subr.mxu0 0.0
  %96 = vmatpush1.msra.mxu0 %v49
  %97 = vmatprep.subr.mxu0 0.0
  %98 = vmatpush1.msra.mxu0 %v50
  %99 = vmatprep.subr.mxu0 0.0
  %100 = vmatpush1.msra.mxu0 %v51
  %101 = vmatprep.subr.mxu0 0.0
  %102 = vmatpush1.msra.mxu0 %v52
  %103 = vmatprep.subr.mxu0 0.0
  %104 = vmatpush1.msra.mxu0 %v53
  %105 = vmatprep.subr.mxu0 0.0
  %106 = vmatpush1.msra.mxu0 %v54
  %107 = vmatprep.subr.mxu0 0.0
  %108 = vmatpush1.msra.mxu0 %v55
  %109 = vmatprep.subr.mxu0 0.0
  %110 = vmatpush1.msra.mxu0 %v56
  %111 = vmatprep.subr.mxu0 0.0
  %112 = vmatpush1.msra.mxu0 %v57
  %113 = vmatprep.subr.mxu0 0.0
  %114 = vmatpush1.msra.mxu0 %v58
  %115 = vmatprep.subr.mxu0 0.0
  %116 = vmatpush1.msra.mxu0 %v59
  %117 = vmatprep.subr.mxu0 0.0
  %118 = vmatpush1.msra.mxu0 0.0
  %119 = vmatprep.subr.mxu0 0.0
  %120 = vmatpush1.msra.mxu0 0.0
  %121 = vmatprep.subr.mxu0 0.0
  %122 = vmatpush1.msra.mxu0 0.0
  %123 = vmatprep.subr.mxu0 0.0
  %124 = vmatpush1.msra.mxu0 0.0
  %125 = vmatprep.subr.mxu0 0.0
  %126 = vmatpush1.msra.mxu0 0.0
  %127 = vmatprep.subr.mxu0 0.0
  %128 = vmatpush1.msra.mxu0 0.0
  %129 = vmatprep.subr.mxu0 0.0
  %130 = vmatpush1.msra.mxu0 0.0
  %131 = vmatprep.subr.mxu0 0.0
  %132 = vmatpush1.msra.mxu0 0.0
  %133 = vmatprep.subr.mxu0 0.0
  %134 = vmatpush1.msra.mxu0 0.0
  %135 = vmatprep.mubr.f32.mxu0 %v69
  %136 = vmatmul.mubr.f32.gmra.mrb[0].mxu0 %v35
  %v137 = vpop.f32.mrb[0].mxu0
  %v138 = vadd.f32 %v65, %v137
  %v139 = vpop.f32.mrb[0].mxu0
  %140 = vdwg.mxu0
  %v141 = vmax.f32 %v138, 0.0
  %vm142 = vcmask 622080
  %v143 = vsel %vm142, %v138, -inf
  %144 = vmax.xlane.f32.xlu0 %v143
  %v145 = vpop.xlane.xlu0 %144
  %v146 = vsub.f32 %v138, %v145
  %v147 = vmul.f32 %v146, 1.442695
  %v148 = vpow.pop %v147
  %v149 = vld [vmem:[%s4] sm:$0xff]
  %v150 = vld [vmem:[%s4 + $0x8] sm:$0xf]
  %152 = vrot.lane.b32.xlu0 %v148, 64
  %v153 = vpop.permute.xlu0 %152
  %vm154 = vcmask 97280
  %v155 = vsel %vm154, %v153, 0
  %vm157 = vcmask 1043456
  %v159 = vsel %vm157, %v150, 0
  %161 = vmatprep.subr.mxu0 0.0
  %162 = vmatpush1.msra.mxu0 %v149
  %163 = vmatprep.subr.mxu0 0.0
  %164 = vmatpush1.msra.mxu0 %v159
  %165 = vmatprep.subr.mxu0 0.0
  %166 = vmatpush1.msra.mxu0 0.0
  %167 = vmatprep.subr.mxu0 0.0
  %168 = vmatpush1.msra.mxu0 0.0
  %169 = vmatprep.subr.mxu0 0.0
  %170 = vmatpush1.msra.mxu0 0.0
  %171 = vmatprep.subr.mxu0 0.0
  %172 = vmatpush1.msra.mxu0 0.0
  %173 = vmatprep.subr.mxu0 0.0
  %174 = vmatpush1.msra.mxu0 0.0
  %175 = vmatprep.subr.mxu0 0.0
  %176 = vmatpush1.msra.mxu0 0.0
  %177 = vmatprep.subr.mxu0 0.0
  %178 = vmatpush1.msra.mxu0 0.0
  %179 = vmatprep.subr.mxu0 0.0
  %180 = vmatpush1.msra.mxu0 0.0
  %181 = vmatprep.subr.mxu0 0.0
  %182 = vmatpush1.msra.mxu0 0.0
  %183 = vmatprep.subr.mxu0 0.0
  %184 = vmatpush1.msra.mxu0 0.0
  %185 = vmatprep.subr.mxu0 0.0
  %186 = vmatpush1.msra.mxu0 0.0
  %187 = vmatprep.subr.mxu0 0.0
  %188 = vmatpush1.msra.mxu0 0.0
  %189 = vmatprep.subr.mxu0 0.0
  %190 = vmatpush1.msra.mxu0 0.0
  %191 = vmatprep.subr.mxu0 0.0
  %192 = vmatpush1.msra.mxu0 0.0
  %193 = vmatprep.subr.mxu0 0.0
  %194 = vmatpush1.msra.mxu0 0.0
  %195 = vmatprep.subr.mxu0 0.0
  %196 = vmatpush1.msra.mxu0 0.0
  %197 = vmatprep.subr.mxu0 0.0
  %198 = vmatpush1.msra.mxu0 0.0
  %199 = vmatprep.subr.mxu0 0.0
  %200 = vmatpush1.msra.mxu0 0.0
  %201 = vmatprep.subr.mxu0 0.0
  %202 = vmatpush1.msra.mxu0 0.0
  %203 = vmatprep.subr.mxu0 0.0
  %204 = vmatpush1.msra.mxu0 0.0
  %205 = vmatprep.subr.mxu0 0.0
  %206 = vmatpush1.msra.mxu0 0.0
  %207 = vmatprep.subr.mxu0 0.0
  %208 = vmatpush1.msra.mxu0 0.0
  %209 = vmatprep.subr.mxu0 0.0
  %210 = vmatpush1.msra.mxu0 0.0
  %211 = vmatprep.subr.mxu0 0.0
  %212 = vmatpush1.msra.mxu0 0.0
  %213 = vmatprep.subr.mxu0 0.0
  %214 = vmatpush1.msra.mxu0 0.0
  %215 = vmatprep.subr.mxu0 0.0
  %216 = vmatpush1.msra.mxu0 0.0
  %217 = vmatprep.subr.mxu0 0.0
  %218 = vmatpush1.msra.mxu0 0.0
  %219 = vmatprep.subr.mxu0 0.0
  %220 = vmatpush1.msra.mxu0 0.0
  %221 = vmatprep.subr.mxu0 0.0
  %222 = vmatpush1.msra.mxu0 0.0
  %223 = vmatprep.subr.mxu0 0.0
  %224 = vmatpush1.msra.mxu0 0.0
  %225 = vmatprep.mubr.f32.mxu0 0.0
  %226 = vmatmul.mubr.f32.gmra.mrb[0].mxu0 %v155
  %v227 = vpop.f32.mrb[0].mxu0
  %v228 = vadd.f32 0.0, %v227
  %v229 = vpop.f32.mrb[0].mxu0
  %230 = vdwg.mxu0
  %v231 = vrcp.pop %v228
  %233 = vrot.lane.b32.xlu0 %v231, 64
  %v234 = vpop.permute.xlu0 %233
  %v236 = vmul.f32 %v148, %v234
  %v237 = vld [vmem:[%s5] sm:$0xff]
  %v238 = vld [vmem:[%s5 + $0x8] sm:$0xff]
  %v239 = vld [vmem:[%s5 + $0x10] sm:$0xf]
  %v240 = vld [vmem:[%s5 + $0x18] sm:$0xf]
  %242 = vrot.lane.b32.xlu0 %v236, 64
  %v243 = vpop.permute.xlu0 %242
  %v244 = vsel %vm154, %v243, 0
  %v247 = vsel %vm157, %v239, 0
  %v250 = vsel %vm157, %v240, 0
  %252 = vmatprep.subr.mxu0 %v238
  %253 = vmatpush1.msra.mxu0 %v237
  %254 = vmatprep.subr.mxu0 %v250
  %255 = vmatpush1.msra.mxu0 %v247
  %256 = vmatprep.subr.mxu0 0.0
  %257 = vmatpush1.msra.mxu0 0.0
  %258 = vmatprep.subr.mxu0 0.0
  %259 = vmatpush1.msra.mxu0 0.0
  %260 = vmatprep.subr.mxu0 0.0
  %261 = vmatpush1.msra.mxu0 0.0
  %262 = vmatprep.subr.mxu0 0.0
  %263 = vmatpush1.msra.mxu0 0.0
  %264 = vmatprep.subr.mxu0 0.0
  %265 = vmatpush1.msra.mxu0 0.0
  %266 = vmatprep.subr.mxu0 0.0
  %267 = vmatpush1.msra.mxu0 0.0
  %268 = vmatprep.subr.mxu0 0.0
  %269 = vmatpush1.msra.mxu0 0.0
  %270 = vmatprep.subr.mxu0 0.0
  %271 = vmatpush1.msra.mxu0 0.0
  %272 = vmatprep.subr.mxu0 0.0
  %273 = vmatpush1.msra.mxu0 0.0
  %274 = vmatprep.subr.mxu0 0.0
  %275 = vmatpush1.msra.mxu0 0.0
  %276 = vmatprep.subr.mxu0 0.0
  %277 = vmatpush1.msra.mxu0 0.0
  %278 = vmatprep.subr.mxu0 0.0
  %279 = vmatpush1.msra.mxu0 0.0
  %280 = vmatprep.subr.mxu0 0.0
  %281 = vmatpush1.msra.mxu0 0.0
  %282 = vmatprep.subr.mxu0 0.0
  %283 = vmatpush1.msra.mxu0 0.0
  %284 = vmatprep.subr.mxu0 0.0
  %285 = vmatpush1.msra.mxu0 0.0
  %286 = vmatprep.subr.mxu0 0.0
  %287 = vmatpush1.msra.mxu0 0.0
  %288 = vmatprep.subr.mxu0 0.0
  %289 = vmatpush1.msra.mxu0 0.0
  %290 = vmatprep.subr.mxu0 0.0
  %291 = vmatpush1.msra.mxu0 0.0
  %292 = vmatprep.subr.mxu0 0.0
  %293 = vmatpush1.msra.mxu0 0.0
  %294 = vmatprep.subr.mxu0 0.0
  %295 = vmatpush1.msra.mxu0 0.0
  %296 = vmatprep.subr.mxu0 0.0
  %297 = vmatpush1.msra.mxu0 0.0
  %298 = vmatprep.subr.mxu0 0.0
  %299 = vmatpush1.msra.mxu0 0.0
  %300 = vmatprep.subr.mxu0 0.0
  %301 = vmatpush1.msra.mxu0 0.0
  %302 = vmatprep.subr.mxu0 0.0
  %303 = vmatpush1.msra.mxu0 0.0
  %304 = vmatprep.subr.mxu0 0.0
  %305 = vmatpush1.msra.mxu0 0.0
  %306 = vmatprep.subr.mxu0 0.0
  %307 = vmatpush1.msra.mxu0 0.0
  %308 = vmatprep.subr.mxu0 0.0
  %309 = vmatpush1.msra.mxu0 0.0
  %310 = vmatprep.subr.mxu0 0.0
  %311 = vmatpush1.msra.mxu0 0.0
  %312 = vmatprep.subr.mxu0 0.0
  %313 = vmatpush1.msra.mxu0 0.0
  %314 = vmatprep.subr.mxu0 0.0
  %315 = vmatpush1.msra.mxu0 0.0
  %316 = vmatprep.mubr.f32.mxu0 0.0
  %317 = vmatmul.mubr.f32.gmra.mrb[0].mxu0 %v244
  %v318 = vpop.f32.mrb[0].mxu0
  %v319 = vadd.f32 0.0, %v318
  %v320 = vpop.f32.mrb[0].mxu0
  %v321 = vadd.f32 0.0, %v320
  %322 = vdwg.mxu0
  %324 = vrot.lane.b32.xlu0 %v141, 64
  %v325 = vpop.permute.xlu0 %324
  %vm327 = vcmask 523264
  %v328 = vsel %vm327, %v141, %v325
  %v329 = vmul.f32 %v319, %v328
  %v330 = vmul.f32 %v321, %v141
  %v331 = vld [vmem:[%s6] sm:$0xff]
  %v332 = vld [vmem:[%s6 + $0x8] sm:$0xff]
  %v333 = vld [vmem:[%s6 + $0x10] sm:$0xff]
  %v334 = vld [vmem:[%s6 + $0x18] sm:$0xff]
  %v335 = vld [vmem:[%s6 + $0x20] sm:$0xff]
  %v336 = vld [vmem:[%s6 + $0x28] sm:$0xff]
  %v337 = vld [vmem:[%s6 + $0x30] sm:$0xff]
  %v338 = vld [vmem:[%s6 + $0x38] sm:$0xff]
  %v339 = vld [vmem:[%s6 + $0x40] sm:$0xff]
  %v340 = vld [vmem:[%s6 + $0x48] sm:$0xff]
  %v341 = vld [vmem:[%s6 + $0x50] sm:$0xff]
  %v342 = vld [vmem:[%s6 + $0x58] sm:$0xff]
  %v343 = vld [vmem:[%s6 + $0x60] sm:$0xff]
  %v344 = vld [vmem:[%s6 + $0x68] sm:$0xff]
  %v345 = vld [vmem:[%s6 + $0x70] sm:$0xff]
  %v346 = vld [vmem:[%s6 + $0x78] sm:$0xff]
  %v347 = vld [vmem:[%s6 + $0x80] sm:$0xff]
  %v348 = vld [vmem:[%s6 + $0x88] sm:$0xff]
  %v349 = vld [vmem:[%s6 + $0x90] sm:$0xff]
  %v350 = vld [vmem:[%s6 + $0x98] sm:$0xff]
  %v351 = vld [vmem:[%s6 + $0xa0] sm:$0xff]
  %v352 = vld [vmem:[%s6 + $0xa8] sm:$0xff]
  %v353 = vld [vmem:[%s6 + $0xb0] sm:$0xff]
  %v354 = vld [vmem:[%s6 + $0xb8] sm:$0xff]
  %v355 = vld [vmem:[%s7] sm:$0x1]
  %v357 = vlaneseq
  %v358 = vshrl.u32 %v357, 7
  %v359 = vsub.s32 0, %v358
  %v360 = vrot.slane %v355, %v359
  %v363 = vsel %vm327, %v330, 0
  %365 = vmatprep.subr.mxu0 0.0
  %366 = vmatpush1.msra.mxu0 %v331
  %367 = vmatprep.subr.mxu0 0.0
  %368 = vmatpush1.msra.mxu0 %v332
  %369 = vmatprep.subr.mxu0 0.0
  %370 = vmatpush1.msra.mxu0 %v333
  %371 = vmatprep.subr.mxu0 0.0
  %372 = vmatpush1.msra.mxu0 %v334
  %373 = vmatprep.subr.mxu0 0.0
  %374 = vmatpush1.msra.mxu0 %v335
  %375 = vmatprep.subr.mxu0 0.0
  %376 = vmatpush1.msra.mxu0 %v336
  %377 = vmatprep.subr.mxu0 0.0
  %378 = vmatpush1.msra.mxu0 %v337
  %379 = vmatprep.subr.mxu0 0.0
  %380 = vmatpush1.msra.mxu0 %v338
  %381 = vmatprep.subr.mxu0 0.0
  %382 = vmatpush1.msra.mxu0 %v339
  %383 = vmatprep.subr.mxu0 0.0
  %384 = vmatpush1.msra.mxu0 %v340
  %385 = vmatprep.subr.mxu0 0.0
  %386 = vmatpush1.msra.mxu0 %v341
  %387 = vmatprep.subr.mxu0 0.0
  %388 = vmatpush1.msra.mxu0 %v342
  %389 = vmatprep.subr.mxu0 0.0
  %390 = vmatpush1.msra.mxu0 %v343
  %391 = vmatprep.subr.mxu0 0.0
  %392 = vmatpush1.msra.mxu0 %v344
  %393 = vmatprep.subr.mxu0 0.0
  %394 = vmatpush1.msra.mxu0 %v345
  %395 = vmatprep.subr.mxu0 0.0
  %396 = vmatpush1.msra.mxu0 %v346
  %397 = vmatprep.subr.mxu0 0.0
  %398 = vmatpush1.msra.mxu0 %v347
  %399 = vmatprep.subr.mxu0 0.0
  %400 = vmatpush1.msra.mxu0 %v348
  %401 = vmatprep.subr.mxu0 0.0
  %402 = vmatpush1.msra.mxu0 %v349
  %403 = vmatprep.subr.mxu0 0.0
  %404 = vmatpush1.msra.mxu0 %v350
  %405 = vmatprep.subr.mxu0 0.0
  %406 = vmatpush1.msra.mxu0 %v351
  %407 = vmatprep.subr.mxu0 0.0
  %408 = vmatpush1.msra.mxu0 %v352
  %409 = vmatprep.subr.mxu0 0.0
  %410 = vmatpush1.msra.mxu0 %v353
  %411 = vmatprep.subr.mxu0 0.0
  %412 = vmatpush1.msra.mxu0 %v354
  %413 = vmatprep.subr.mxu0 0.0
  %414 = vmatpush1.msra.mxu0 0.0
  %415 = vmatprep.subr.mxu0 0.0
  %416 = vmatpush1.msra.mxu0 0.0
  %417 = vmatprep.subr.mxu0 0.0
  %418 = vmatpush1.msra.mxu0 0.0
  %419 = vmatprep.subr.mxu0 0.0
  %420 = vmatpush1.msra.mxu0 0.0
  %421 = vmatprep.subr.mxu0 0.0
  %422 = vmatpush1.msra.mxu0 0.0
  %423 = vmatprep.subr.mxu0 0.0
  %424 = vmatpush1.msra.mxu0 0.0
  %425 = vmatprep.subr.mxu0 0.0
  %426 = vmatpush1.msra.mxu0 0.0
  %427 = vmatprep.subr.mxu0 0.0
  %428 = vmatpush1.msra.mxu0 0.0
  %429 = vmatprep.mubr.f32.mxu0 %v363
  %430 = vmatmul.mubr.f32.gmra.mrb[0].mxu0 %v329
  %v431 = vpop.f32.mrb[0].mxu0
  %v432 = vadd.f32 %v360, %v431
  %v433 = vpop.f32.mrb[0].mxu0
  %434 = vdwg.mxu0
  %v435 = vmax.f32 %v432, 0.0
  %v436 = vld [vmem:[%s8] sm:$0xff]
  %v437 = vld [vmem:[%s8 + $0x8] sm:$0xff]
  %v438 = vld [vmem:[%s8 + $0x10] sm:$0xff]
  %v439 = vld [vmem:[%s9] sm:$0x1]
  %v441 = vlaneseq
  %v442 = vshrl.u32 %v441, 7
  %v443 = vsub.s32 0, %v442
  %v444 = vrot.slane %v439, %v443
  %vm446 = vcmask 195584
  %v448 = vsel %vm446, %v435, 0
  %450 = vmatprep.subr.mxu0 0.0
  %451 = vmatpush1.msra.mxu0 %v436
  %452 = vmatprep.subr.mxu0 0.0
  %453 = vmatpush1.msra.mxu0 %v437
  %454 = vmatprep.subr.mxu0 0.0
  %455 = vmatpush1.msra.mxu0 %v438
  %456 = vmatprep.subr.mxu0 0.0
  %457 = vmatpush1.msra.mxu0 0.0
  %458 = vmatprep.subr.mxu0 0.0
  %459 = vmatpush1.msra.mxu0 0.0
  %460 = vmatprep.subr.mxu0 0.0
  %461 = vmatpush1.msra.mxu0 0.0
  %462 = vmatprep.subr.mxu0 0.0
  %463 = vmatpush1.msra.mxu0 0.0
  %464 = vmatprep.subr.mxu0 0.0
  %465 = vmatpush1.msra.mxu0 0.0
  %466 = vmatprep.subr.mxu0 0.0
  %467 = vmatpush1.msra.mxu0 0.0
  %468 = vmatprep.subr.mxu0 0.0
  %469 = vmatpush1.msra.mxu0 0.0
  %470 = vmatprep.subr.mxu0 0.0
  %471 = vmatpush1.msra.mxu0 0.0
  %472 = vmatprep.subr.mxu0 0.0
  %473 = vmatpush1.msra.mxu0 0.0
  %474 = vmatprep.subr.mxu0 0.0
  %475 = vmatpush1.msra.mxu0 0.0
  %476 = vmatprep.subr.mxu0 0.0
  %477 = vmatpush1.msra.mxu0 0.0
  %478 = vmatprep.subr.mxu0 0.0
  %479 = vmatpush1.msra.mxu0 0.0
  %480 = vmatprep.subr.mxu0 0.0
  %481 = vmatpush1.msra.mxu0 0.0
  %482 = vmatprep.subr.mxu0 0.0
  %483 = vmatpush1.msra.mxu0 0.0
  %484 = vmatprep.subr.mxu0 0.0
  %485 = vmatpush1.msra.mxu0 0.0
  %486 = vmatprep.subr.mxu0 0.0
  %487 = vmatpush1.msra.mxu0 0.0
  %488 = vmatprep.subr.mxu0 0.0
  %489 = vmatpush1.msra.mxu0 0.0
  %490 = vmatprep.subr.mxu0 0.0
  %491 = vmatpush1.msra.mxu0 0.0
  %492 = vmatprep.subr.mxu0 0.0
  %493 = vmatpush1.msra.mxu0 0.0
  %494 = vmatprep.subr.mxu0 0.0
  %495 = vmatpush1.msra.mxu0 0.0
  %496 = vmatprep.subr.mxu0 0.0
  %497 = vmatpush1.msra.mxu0 0.0
  %498 = vmatprep.subr.mxu0 0.0
  %499 = vmatpush1.msra.mxu0 0.0
  %500 = vmatprep.subr.mxu0 0.0
  %501 = vmatpush1.msra.mxu0 0.0
  %502 = vmatprep.subr.mxu0 0.0
  %503 = vmatpush1.msra.mxu0 0.0
  %504 = vmatprep.subr.mxu0 0.0
  %505 = vmatpush1.msra.mxu0 0.0
  %506 = vmatprep.subr.mxu0 0.0
  %507 = vmatpush1.msra.mxu0 0.0
  %508 = vmatprep.subr.mxu0 0.0
  %509 = vmatpush1.msra.mxu0 0.0
  %510 = vmatprep.subr.mxu0 0.0
  %511 = vmatpush1.msra.mxu0 0.0
  %512 = vmatprep.subr.mxu0 0.0
  %513 = vmatpush1.msra.mxu0 0.0
  %514 = vmatprep.mubr.f32.mxu0 0.0
  %515 = vmatmul.mubr.f32.gmra.mrb[0].mxu0 %v448
  %v516 = vpop.f32.mrb[0].mxu0
  %v517 = vadd.f32 %v444, %v516
  %v518 = vpop.f32.mrb[0].mxu0
  %519 = vdwg.mxu0
  %v520 = vsub.f32 0.0, %v517
  %v521 = vmul.f32 %v520, 1.442695
  %v522 = vpow.pop %v521
  %v523 = vadd.f32 %v522, 1.0
  %v524 = vrcp.pop %v523
  %v525 = vmax.f32 %v524, 1e-15
  %v526 = vmin.f32 %v525, 1.0
  %528 = vrot.lane.b32.xlu0 %v526, 127
  %v529 = vpop.permute.xlu0 %528
  %v531 = vmul.f32 %v526, %v529
  %v532 = vld [vmem:[%s1] sm:$0xff]
  %v533 = vmax.f32 %v526, 0.0
  %v534 = vmul.f32 %v526, %v532
  %v535 = vsub.f32 %v533, %v534
  %v536 = vand.u32 2147483647, %v526
  %v537 = vsub.f32 0.0, %v536
  %v538 = vmul.f32 %v537, 1.442695
  %v539 = vpow.pop %v538
  %v540 = vadd.f32 %v539, 1.0
  %v541 = vlog2.pop %v540
  %v542 = vmul.f32 %v541, 0.6931472
  %v543 = vadd.f32 %v535, %v542
  %v544 = vmax.f32 %v531, 0.0
  %546 = vrot.lane.b32.xlu0 %v532, 127
  %v547 = vpop.permute.xlu0 %546
  %v549 = vmul.f32 %v531, %v547
  %v550 = vsub.f32 %v544, %v549
  %v551 = vand.u32 2147483647, %v531
  %v552 = vsub.f32 0.0, %v551
  %v553 = vmul.f32 %v552, 1.442695
  %v554 = vpow.pop %v553
  %v555 = vadd.f32 %v554, 1.0
  %v556 = vlog2.pop %v555
  %v557 = vmul.f32 %v556, 0.6931472
  %v558 = vadd.f32 %v550, %v557
  %v559 = vmax.f32 %v526, 1e-06
  %v560 = vrcp.pop %v559
  %v561 = vmul.f32 %v532, %v560
  %v562 = vmax.f32 %v561, -15.0
  %v563 = vmin.f32 %v562, 15.0
  %565 = vrot.lane.b32.xlu0 %v563, 2
  %v566 = vpop.permute.xlu0 %565
  %v568 = vmul.f32 %v526, %v566
  %v569 = vmul.f32 %v526, %v526
  %v570 = vmul.f32 %v569, %v566
  %572 = vrot.lane.b32.xlu0 %v531, 3
  %v573 = vpop.permute.xlu0 %572
  %576 = vrot.lane.b32.xlu0 %v543, 8
  %v577 = vpop.permute.xlu0 %576
  %579 = vrot.lane.b32.xlu0 %v526, 8
  %v580 = vpop.permute.xlu0 %579
  %582 = vrot.lane.b32.xlu0 %v563, 11
  %v583 = vpop.permute.xlu0 %582
  %586 = vrot.lane.b32.xlu0 %v568, 10
  %v587 = vpop.permute.xlu0 %586
  %590 = vrot.lane.b32.xlu0 %v570, 11
  %v591 = vpop.permute.xlu0 %590
  %594 = vrot.lane.b32.xlu0 %v558, 14
  %v595 = vpop.permute.xlu0 %594
  %vm597 = vcmask 23552
  %v598 = vsel %vm597, %v526, %v573
  %vm599 = vcmask 31744
  %v600 = vsel %vm599, %v598, 0.0
  %vm601 = vcmask 39936
  %v602 = vsel %vm601, %v600, 0.0
  %vm603 = vcmask 48128
  %v604 = vsel %vm603, %v602, 0.0
  %vm605 = vcmask 56320
  %v606 = vsel %vm605, %v604, 0.0
  %vm607 = vcmask 64512
  %v608 = vsel %vm607, %v606, %v577
  %vm609 = vcmask 72704
  %v610 = vsel %vm609, %v608, %v577
  %vm611 = vcmask 80896
  %v612 = vsel %vm611, %v610, %v580
  %vm613 = vcmask 89088
  %v614 = vsel %vm613, %v612, %v583
  %v615 = vsel %vm154, %v614, %v587
  %vm616 = vcmask 105472
  %v617 = vsel %vm616, %v615, %v591
  %vm618 = vcmask 113664
  %v619 = vsel %vm618, %v617, %v595
  %vm620 = vcmask 121856
  %v621 = vsel %vm620, %v619, 0.0
  %vm622 = vcmask 130048
  %623 = vst.msk [vmem:[%s10] sm:$0xff] %vm622, %v621
  // Predicated region
  $region42: #{_lambda_.1} parent=0 // pred_check
    _
  $region43: #{_lambda_.1} parent=0 // pred_check_branch
    %625 = sbr.rel (0) target = $region45
  $region44: #{_lambda_.1} parent=0 // pred_region
    _
  $region45: #{_lambda_.1} parent=0 // pred_fallthru
    _
  // Predicated region
  $region46: #{_lambda_.1} parent=0 // pred_check
    _
  $region47: #{_lambda_.1} parent=0 // pred_check_branch
    %627 = sbr.rel (0) target = $region49
  $region48: #{_lambda_.1} parent=0 // pred_region
    _
  $region49: #{_lambda_.1} parent=0 // pred_fallthru
    _

</llo_original>
